<compile_context>
chip_gen: v7x
topology: tpu7x:2x2x1
jax: 0.10.0
libtpu: 0.0.40
codegen_flags: <defaults>
</compile_context>

<pallas_src>
import functools

import jax
import jax.numpy as jnp
from jax.experimental import pallas as pl
from jax.experimental.pallas import tpu as pltpu


def _round_up(a: int, b: int) -> int:
    return (a + b - 1) // b * b


def _vmem_limit_bytes() -> int:
    # ~3/4 of physical VMEM: 96 MiB on v5e/v6e (128 MiB), 48 MiB on v7x (64 MiB).
    try:
        cap = int(pltpu.get_tpu_info().vmem_capacity_bytes)
    except Exception:
        cap = 64 * 1024 * 1024  # conservative fallback (v7x-sized)
    return (cap * 3) // 4


def _resident_spec(block_shape):
    """BlockSpec for an operand whose block is identical for every grid step."""
    index_map = lambda i: (0, 0)
    try:
        # Constant index_map => tile is DMA'd once and stays resident; a single
        # buffer suffices (default double-buffering would only double its VMEM).
        return pl.BlockSpec(block_shape, index_map, pipeline_mode=pl.Buffered(1))
    except (AttributeError, TypeError):
        return pl.BlockSpec(block_shape, index_map)


def lin_rnn_kernel(x_ref, h_ref, wi_ref, wh_ref, b_ref, out_ref):
    # Two MXU matmuls (bf16 operands) into a shared f32 accumulator, + bias.
    acc = jnp.dot(x_ref[...], wi_ref[...], preferred_element_type=jnp.float32)
    acc = acc + jnp.dot(h_ref[...], wh_ref[...], preferred_element_type=jnp.float32)
    out_ref[...] = (acc + b_ref[...]).astype(out_ref.dtype)


def prepare_lin_rnn_params(w_i2h, w_h2h, b_h2h, *, compute_dtype=jnp.bfloat16):
    """One-time parameter prep: transpose, pad lane dims to 128, cast to bf16.

    Done at parameter-setup time so the per-step forward pays no wrapper-side
    weight transpose/pad/cast HBM traffic.
    """
    hidden_size, input_size = w_i2h.shape
    ki_pad = _round_up(input_size, 128)
    kh_pad = _round_up(hidden_size, 128)
    h_pad = _round_up(hidden_size, 128)
    wi_p = jnp.pad(w_i2h.T, ((0, ki_pad - input_size), (0, h_pad - hidden_size)))
    wh_p = jnp.pad(w_h2h.T, ((0, kh_pad - hidden_size), (0, h_pad - hidden_size)))
    b_p = jnp.pad(b_h2h.reshape(1, hidden_size), ((0, 0), (0, h_pad - hidden_size)))
    # Weights in bf16 (MXU-native); bias stays f32 (added to the f32 accumulator).
    return (wi_p.astype(compute_dtype),
            wh_p.astype(compute_dtype),
            b_p.astype(jnp.float32))


@functools.partial(jax.jit, static_argnames=("block_rows",))
def lin_rnn_forward(x, hidden_state, wi_p, wh_p, b_p, *, block_rows=512):
    """Returns (new_hidden_state, new_hidden_state[-1]) like the PyTorch module."""
    n, input_size = x.shape
    n_h, hidden_size = hidden_state.shape
    assert n == n_h
    ki_pad, h_pad = wi_p.shape
    kh_pad = wh_p.shape[0]
    compute_dtype = wi_p.dtype

    # Row tile: multiple of 16 (bf16 sublane packing), capped at block_rows.
    tm = _round_up(min(block_rows, _round_up(n, 16)), 16)
    n_pad = _round_up(n, tm)
    grid_m = n_pad // tm

    # Pad activations (zero K-columns contribute exactly 0) and cast to bf16.
    # x and h are passed separately: no fused [x|h] concat materialized in HBM.
    x_p = jnp.pad(x, ((0, n_pad - n), (0, ki_pad - input_size))).astype(compute_dtype)
    h_p = jnp.pad(hidden_state,
                  ((0, n_pad - n), (0, kh_pad - hidden_size))).astype(compute_dtype)

    flops = 2 * n_pad * (ki_pad + kh_pad) * h_pad
    bytes_accessed = (x_p.size * x_p.dtype.itemsize
                      + h_p.size * h_p.dtype.itemsize
                      + wi_p.size * wi_p.dtype.itemsize
                      + wh_p.size * wh_p.dtype.itemsize
                      + b_p.size * b_p.dtype.itemsize
                      + n_pad * h_pad * x.dtype.itemsize)

    out_p = pl.pallas_call(
        lin_rnn_kernel,
        out_shape=jax.ShapeDtypeStruct((n_pad, h_pad), x.dtype),
        grid=(grid_m,),
        in_specs=[
            # Row-tiled activations: pipelined/double-buffered over the grid.
            pl.BlockSpec((tm, ki_pad), lambda i: (i, 0)),
            pl.BlockSpec((tm, kh_pad), lambda i: (i, 0)),
            # Weights + bias: constant index_map, resident, single-buffered.
            _resident_spec((ki_pad, h_pad)),
            _resident_spec((kh_pad, h_pad)),
            _resident_spec((1, h_pad)),
        ],
        out_specs=pl.BlockSpec((tm, h_pad), lambda i: (i, 0)),
        compiler_params=pltpu.CompilerParams(
            dimension_semantics=("parallel",),
            vmem_limit_bytes=_vmem_limit_bytes(),
        ),
        cost_estimate=pl.CostEstimate(
            flops=flops, transcendentals=0, bytes_accessed=bytes_accessed),
    )(x_p, h_p, wi_p, wh_p, b_p)

    out = out_p[:n, :hidden_size]
    # PyTorch returns (hidden_state, hidden_state[-1]); last-row slice stays
    # host-side (no in-kernel gather needed).
    return out, out[-1]


if __name__ == "__main__":
    # Small shapes consistent with the module's forward:
    #   seq (rows) = 8, input_size = 16, hidden_size = 32
    seq, input_size, hidden_size = 8, 16, 32

    key = jax.random.PRNGKey(0)
    k_x, k_h, k_wi, k_wh, k_b = jax.random.split(key, 5)

    x = jax.random.normal(k_x, (seq, input_size), dtype=jnp.float32)
    hidden = jax.random.normal(k_h, (seq, hidden_size), dtype=jnp.float32)

    # Deterministic parameter init (PyTorch-Linear-style uniform bounds).
    bound_i = 1.0 / (input_size ** 0.5)
    bound_h = 1.0 / (hidden_size ** 0.5)
    w_i2h = jax.random.uniform(k_wi, (hidden_size, input_size),
                               minval=-bound_i, maxval=bound_i, dtype=jnp.float32)
    w_h2h = jax.random.uniform(k_wh, (hidden_size, hidden_size),
                               minval=-bound_h, maxval=bound_h, dtype=jnp.float32)
    b_h2h = jax.random.uniform(k_b, (hidden_size,),
                               minval=-bound_h, maxval=bound_h, dtype=jnp.float32)

    # One-time parameter prep (hoisted out of the per-step forward path).
    wi_p, wh_p, b_p = prepare_lin_rnn_params(w_i2h, w_h2h, b_h2h)

    new_hidden, hn = lin_rnn_forward(x, hidden, wi_p, wh_p, b_p)
    jax.block_until_ready((new_hidden, hn))

    # References: exact f32, and a bf16-operand / f32-accumulate match of the kernel.
    ref_f32 = x @ w_i2h.T + (hidden @ w_h2h.T + b_h2h)
    xb = x.astype(jnp.bfloat16)
    hb = hidden.astype(jnp.bfloat16)
    ref_bf16 = (jnp.dot(xb, w_i2h.T.astype(jnp.bfloat16),
                        preferred_element_type=jnp.float32)
                + jnp.dot(hb, w_h2h.T.astype(jnp.bfloat16),
                          preferred_element_type=jnp.float32)
                + b_h2h)

    assert new_hidden.shape == (seq, hidden_size)
    assert hn.shape == (hidden_size,)
    assert jnp.allclose(new_hidden, ref_bf16, atol=2e-3, rtol=2e-3)
    assert jnp.allclose(new_hidden, ref_f32, atol=8e-2, rtol=8e-2)
    assert jnp.allclose(hn, new_hidden[-1])

    print("KERNEL_OK")
</pallas_src>

<mosaic_0001>
module attributes {stable_mosaic.version = 11 : i64} {
  func.func @lin_rnn_kernel(%arg0: i32, %arg1: memref<16x128xbf16, #tpu.memory_space<vmem>>, %arg2: memref<16x128xbf16, #tpu.memory_space<vmem>>, %arg3: memref<128x128xbf16, #tpu.memory_space<vmem>>, %arg4: memref<128x128xbf16, #tpu.memory_space<vmem>>, %arg5: memref<1x128xf32, #tpu.memory_space<vmem>>, %arg6: memref<16x128xf32, #tpu.memory_space<vmem>>) attributes {dimension_semantics = [#tpu.dimension_semantics<parallel>], iteration_bounds = array<i64: 1>, scalar_prefetch = 0 : i64, scratch_operands = 0 : i64, tpu.core_type = #tpu.core_type<tc>, window_params = [{transform_indices = @transform_0, window_bounds = array<i64: 16, 128>}, {transform_indices = @transform_1, window_bounds = array<i64: 16, 128>}, {pipeline_mode = #tpu.pipeline_mode<synchronous>, transform_indices = @transform_2, window_bounds = array<i64: 128, 128>}, {pipeline_mode = #tpu.pipeline_mode<synchronous>, transform_indices = @transform_3, window_bounds = array<i64: 128, 128>}, {pipeline_mode = #tpu.pipeline_mode<synchronous>, transform_indices = @transform_4, window_bounds = array<i64: 1, 128>}, {transform_indices = @transform_5, window_bounds = array<i64: 16, 128>}]} {
    %c0 = arith.constant 0 : index
    %c0_0 = arith.constant 0 : index
    %0 = vector.load %arg1[%c0, %c0_0] : memref<16x128xbf16, #tpu.memory_space<vmem>>, vector<16x128xbf16>
    %c0_1 = arith.constant 0 : index
    %c0_2 = arith.constant 0 : index
    %1 = vector.load %arg3[%c0_1, %c0_2] : memref<128x128xbf16, #tpu.memory_space<vmem>>, vector<128x128xbf16>
    %cst = arith.constant dense<0.000000e+00> : vector<16x128xf32>
    %2 = tpu.matmul %0, %1, %cst {dimension_numbers = #tpu.dot_dimension_numbers<[1], [0], [0], [1], [0, 0, 1, 1], [], []>} : vector<16x128xbf16>, vector<128x128xbf16>, vector<16x128xf32> -> vector<16x128xf32>
    %c0_3 = arith.constant 0 : index
    %c0_4 = arith.constant 0 : index
    %3 = vector.load %arg2[%c0_3, %c0_4] : memref<16x128xbf16, #tpu.memory_space<vmem>>, vector<16x128xbf16>
    %c0_5 = arith.constant 0 : index
    %c0_6 = arith.constant 0 : index
    %4 = vector.load %arg4[%c0_5, %c0_6] : memref<128x128xbf16, #tpu.memory_space<vmem>>, vector<128x128xbf16>
    %cst_7 = arith.constant dense<0.000000e+00> : vector<16x128xf32>
    %5 = tpu.matmul %3, %4, %cst_7 {dimension_numbers = #tpu.dot_dimension_numbers<[1], [0], [0], [1], [0, 0, 1, 1], [], []>} : vector<16x128xbf16>, vector<128x128xbf16>, vector<16x128xf32> -> vector<16x128xf32>
    %6 = arith.addf %2, %5 : vector<16x128xf32>
    %c0_8 = arith.constant 0 : index
    %c0_9 = arith.constant 0 : index
    %7 = vector.load %arg5[%c0_8, %c0_9] : memref<1x128xf32, #tpu.memory_space<vmem>>, vector<1x128xf32>
    %8 = vector.broadcast %7 : vector<1x128xf32> to vector<16x128xf32>
    %9 = arith.addf %6, %8 : vector<16x128xf32>
    %c0_10 = arith.constant 0 : index
    %c0_11 = arith.constant 0 : index
    %10 = vector.load %arg6[%c0_10, %c0_11] : memref<16x128xf32, #tpu.memory_space<vmem>>, vector<16x128xf32>
    tpu.vector_store %arg6[%c0_10, %c0_11], %9 {strides = array<i32>} : memref<16x128xf32, #tpu.memory_space<vmem>>, vector<16x128xf32>,
    return
  }
  func.func @transform_0(%arg0: i32) -> (i32, i32) {
    %c0_i32 = arith.constant 0 : i32
    %c0_i32_0 = arith.constant 0 : i32
    return %arg0, %c0_i32 : i32, i32
  }
  func.func @transform_1(%arg0: i32) -> (i32, i32) {
    %c0_i32 = arith.constant 0 : i32
    %c0_i32_0 = arith.constant 0 : i32
    return %arg0, %c0_i32 : i32, i32
  }
  func.func @transform_2(%arg0: i32) -> (i32, i32) {
    %c0_i32 = arith.constant 0 : i32
    %c0_i32_0 = arith.constant 0 : i32
    %c0_i32_1 = arith.constant 0 : i32
    return %c0_i32, %c0_i32_0 : i32, i32
  }
  func.func @transform_3(%arg0: i32) -> (i32, i32) {
    %c0_i32 = arith.constant 0 : i32
    %c0_i32_0 = arith.constant 0 : i32
    %c0_i32_1 = arith.constant 0 : i32
    return %c0_i32, %c0_i32_0 : i32, i32
  }
  func.func @transform_4(%arg0: i32) -> (i32, i32) {
    %c0_i32 = arith.constant 0 : i32
    %c0_i32_0 = arith.constant 0 : i32
    %c0_i32_1 = arith.constant 0 : i32
    return %c0_i32, %c0_i32_0 : i32, i32
  }
  func.func @transform_5(%arg0: i32) -> (i32, i32) {
    %c0_i32 = arith.constant 0 : i32
    %c0_i32_0 = arith.constant 0 : i32
    return %arg0, %c0_i32 : i32, i32
  }
}

</mosaic_0001>

<llo_original>
// kernel: lin_rnn_forward.1
$region0: #{lin_rnn_forward.1}
  #allocation0 [shape = 'u32[]', space=smem, size = 0x4, offset = 0x4, fixed_abs, tag = 'smem constant byte address 0x4 - core index']
  #allocation1 [shape = 'u32[144,128]{1,0:T(1,128)}', space=vmem, size = 0x12000, scoped, tag = 'internal scratch']
  %s0 = inlined_call_operand.vmem [shape: bf16[16,128], index: 0, kind: input, shape index: {}]
  %s1 = inlined_call_operand.vmem [shape: bf16[16,128], index: 1, kind: input, shape index: {}]
  %s2 = inlined_call_operand.hbm [shape: bf16[128,128], index: 2, kind: input, shape index: {}]
  %s3 = inlined_call_operand.hbm [shape: bf16[128,128], index: 3, kind: input, shape index: {}]
  %s4 = inlined_call_operand.vmem [shape: f32[1,128], index: 4, kind: input, shape index: {}]
  %s5 = inlined_call_operand.vmem [shape: f32[16,128], index: 5, kind: output, shape index: {}]
  %s6 = sld [smem:[#allocation0]]
  $region38: #{lin_rnn_forward.1} parent=0
    _
  %s8 = ssub.s32 1, %s6
  %s9 = scalar_select 0, %s8, %s6
  $region1: #{lin_rnn_forward.1} parent=0
    #allocation2 [shape = 'u8[32768]{0}', space=vmem, size = 0x8000, scoped, tag = 'input window, operand 2, single buffered']
    #allocation3 [shape = 's32[1]{0}', space=sflag, size = 0x4, scoped, tag = 'scoped memory for lin_rnn_forward.1']
    #allocation4 [shape = 'u8[32768]{0}', space=vmem, size = 0x8000, scoped, tag = 'input window, operand 3, single buffered']
    #allocation5 [shape = 's32[1]{0}', space=sflag, size = 0x4, scoped, tag = 'scoped memory for lin_rnn_forward.1']
    %10 = vsyncpa [#allocation3], 0
    %11 = vsyncpa [#allocation5], 0
    // Predicated region
    $region2: #{lin_rnn_forward.1} parent=1 // pred_check
      _
    $region3: #{lin_rnn_forward.1} parent=1 // pred_check_branch
      %13 = sbr.rel (0) target = $region5
    $region4: #{lin_rnn_forward.1} parent=1 // pred_region
      _
    $region5: #{lin_rnn_forward.1} parent=1 // pred_fallthru
      _
    // Predicated region
    $region6: #{lin_rnn_forward.1} parent=1 // pred_check
      _
    $region7: #{lin_rnn_forward.1} parent=1 // pred_check_branch
      %15 = sbr.rel (0) target = $region9
    $region8: #{lin_rnn_forward.1} parent=1 // pred_region
      _
    $region9: #{lin_rnn_forward.1} parent=1 // pred_fallthru
      _
    // Predicated region
    $region10: #{lin_rnn_forward.1} parent=1 // pred_check
      _
    $region11: #{lin_rnn_forward.1} parent=1 // pred_check_branch
      %17 = sbr.rel (0) target = $region13
    $region12: #{lin_rnn_forward.1} parent=1 // pred_region
      %s19 = ssub.s32 1024, 1024
      %20 = vsyncadd [#allocation3], %s19
      %s21 = sshll.u32 [#allocation2], 4
      %s22 = int_to_ptr.vmem [resolvable:$true] %s21
      %27 = dma.hbm_to_vmem [thread:$0]  %s2, 1024, %s22, [#allocation3], 64, 64, 4
    $region13: #{lin_rnn_forward.1} parent=1 // pred_fallthru
      _
    // Predicated region
    $region14: #{lin_rnn_forward.1} parent=1 // pred_check
      _
    $region15: #{lin_rnn_forward.1} parent=1 // pred_check_branch
      %29 = sbr.rel (0) target = $region17
    $region16: #{lin_rnn_forward.1} parent=1 // pred_region
      %s31 = ssub.s32 1024, 1024
      %32 = vsyncadd [#allocation5], %s31
      %s33 = sshll.u32 [#allocation4], 4
      %s34 = int_to_ptr.vmem [resolvable:$true] %s33
      %39 = dma.hbm_to_vmem [thread:$0]  %s3, 1024, %s34, [#allocation5], 64, 64, 4
    $region17: #{lin_rnn_forward.1} parent=1 // pred_fallthru
      _
    // Predicated region
    $region18: #{lin_rnn_forward.1} parent=1 // pred_check
      _
    $region19: #{lin_rnn_forward.1} parent=1 // pred_check_branch
      %41 = sbr.rel (0) target = $region21
    $region20: #{lin_rnn_forward.1} parent=1 // pred_region
      _
    $region21: #{lin_rnn_forward.1} parent=1 // pred_fallthru
      _
    // Predicated region
    $region22: #{lin_rnn_forward.1} parent=1 // pred_check
      _
    $region23: #{lin_rnn_forward.1} parent=1 // pred_check_branch
      %43 = sbr.rel (0) target = $region25
    $region24: #{lin_rnn_forward.1} parent=1 // pred_region
      %44 = dma.done [#allocation3], 1024
    $region25: #{lin_rnn_forward.1} parent=1 // pred_fallthru
      _
    // Predicated region
    $region26: #{lin_rnn_forward.1} parent=1 // pred_check
      _
    $region27: #{lin_rnn_forward.1} parent=1 // pred_check_branch
      %46 = sbr.rel (0) target = $region29
    $region28: #{lin_rnn_forward.1} parent=1 // pred_region
      %47 = dma.done [#allocation5], 1024
    $region29: #{lin_rnn_forward.1} parent=1 // pred_fallthru
      _
    %v49 = vld [vmem:[%s0] sm:$0xf]
    %v50 = vld [vmem:[%s0 + $0x4] sm:$0xf]
    %v51 = vld [vmem:[#allocation2] sm:$0xf]
    %v52 = vld [vmem:[#allocation2 + $0x4] sm:$0xf]
    %v53 = vld [vmem:[#allocation2 + $0x8] sm:$0xf]
    %v54 = vld [vmem:[#allocation2 + $0xc] sm:$0xf]
    %v55 = vld [vmem:[#allocation2 + $0x10] sm:$0xf]
    %v56 = vld [vmem:[#allocation2 + $0x14] sm:$0xf]
    %v57 = vld [vmem:[#allocation2 + $0x18] sm:$0xf]
    %v58 = vld [vmem:[#allocation2 + $0x1c] sm:$0xf]
    %v59 = vld [vmem:[#allocation2 + $0x20] sm:$0xf]
    %v60 = vld [vmem:[#allocation2 + $0x24] sm:$0xf]
    %v61 = vld [vmem:[#allocation2 + $0x28] sm:$0xf]
    %v62 = vld [vmem:[#allocation2 + $0x2c] sm:$0xf]
    %v63 = vld [vmem:[#allocation2 + $0x30] sm:$0xf]
    %v64 = vld [vmem:[#allocation2 + $0x34] sm:$0xf]
    %v65 = vld [vmem:[#allocation2 + $0x38] sm:$0xf]
    %v66 = vld [vmem:[#allocation2 + $0x3c] sm:$0xf]
    %v67 = vld [vmem:[%s1] sm:$0xf]
    %v68 = vld [vmem:[%s1 + $0x4] sm:$0xf]
    %v69 = vld [vmem:[#allocation4] sm:$0xf]
    %v70 = vld [vmem:[#allocation4 + $0x4] sm:$0xf]
    %v71 = vld [vmem:[#allocation4 + $0x8] sm:$0xf]
    %v72 = vld [vmem:[#allocation4 + $0xc] sm:$0xf]
    %v73 = vld [vmem:[#allocation4 + $0x10] sm:$0xf]
    %v74 = vld [vmem:[#allocation4 + $0x14] sm:$0xf]
    %v75 = vld [vmem:[#allocation4 + $0x18] sm:$0xf]
    %v76 = vld [vmem:[#allocation4 + $0x1c] sm:$0xf]
    %v77 = vld [vmem:[#allocation4 + $0x20] sm:$0xf]
    %v78 = vld [vmem:[#allocation4 + $0x24] sm:$0xf]
    %v79 = vld [vmem:[#allocation4 + $0x28] sm:$0xf]
    %v80 = vld [vmem:[#allocation4 + $0x2c] sm:$0xf]
    %v81 = vld [vmem:[#allocation4 + $0x30] sm:$0xf]
    %v82 = vld [vmem:[#allocation4 + $0x34] sm:$0xf]
    %v83 = vld [vmem:[#allocation4 + $0x38] sm:$0xf]
    %v84 = vld [vmem:[#allocation4 + $0x3c] sm:$0xf]
    %v87 = vunpack.c.l.b16 %v67
    %v88 = vunpack.c.l.b16 %v68
    %v89 = vpack.c.b16 %v88, %v87
    %v107 = vunpack.c.l.b16 %v69
    %v108 = vunpack.c.l.b16 %v70
    %v109 = vunpack.c.l.b16 %v71
    %v110 = vunpack.c.l.b16 %v72
    %v111 = vunpack.c.l.b16 %v73
    %v112 = vunpack.c.l.b16 %v74
    %v113 = vunpack.c.l.b16 %v75
    %v114 = vunpack.c.l.b16 %v76
    %v115 = vunpack.c.l.b16 %v77
    %v116 = vunpack.c.l.b16 %v78
    %v117 = vunpack.c.l.b16 %v79
    %v118 = vunpack.c.l.b16 %v80
    %v119 = vunpack.c.l.b16 %v81
    %v120 = vunpack.c.l.b16 %v82
    %v121 = vunpack.c.l.b16 %v83
    %v122 = vunpack.c.l.b16 %v84
    %v123 = vpack.c.b16 %v108, %v107
    %v124 = vpack.c.b16 %v110, %v109
    %v125 = vpack.c.b16 %v112, %v111
    %v126 = vpack.c.b16 %v114, %v113
    %v127 = vpack.c.b16 %v116, %v115
    %v128 = vpack.c.b16 %v118, %v117
    %v129 = vpack.c.b16 %v120, %v119
    %v130 = vpack.c.b16 %v122, %v121
    %139 = vmatprep.subr.bf16.mxu0 0
    %140 = vmatpush1.bf16.msra.mxu0 %v123
    %141 = vmatprep.subr.bf16.mxu0 0
    %142 = vmatpush1.bf16.msra.mxu0 %v124
    %143 = vmatprep.subr.bf16.mxu0 0
    %144 = vmatpush1.bf16.msra.mxu0 %v125
    %145 = vmatprep.subr.bf16.mxu0 0
    %146 = vmatpush1.bf16.msra.mxu0 %v126
    %147 = vmatprep.subr.bf16.mxu0 0
    %148 = vmatpush1.bf16.msra.mxu0 %v127
    %149 = vmatprep.subr.bf16.mxu0 0
    %150 = vmatpush1.bf16.msra.mxu0 %v128
    %151 = vmatprep.subr.bf16.mxu0 0
    %152 = vmatpush1.bf16.msra.mxu0 %v129
    %153 = vmatprep.subr.bf16.mxu0 0
    %154 = vmatpush1.bf16.msra.mxu0 %v130
    %155 = vmatprep.subr.bf16.mxu0 0
    %156 = vmatpush1.bf16.msra.mxu0 0
    %157 = vmatprep.subr.bf16.mxu0 0
    %158 = vmatpush1.bf16.msra.mxu0 0
    %159 = vmatprep.subr.bf16.mxu0 0
    %160 = vmatpush1.bf16.msra.mxu0 0
    %161 = vmatprep.subr.bf16.mxu0 0
    %162 = vmatpush1.bf16.msra.mxu0 0
    %163 = vmatprep.subr.bf16.mxu0 0
    %164 = vmatpush1.bf16.msra.mxu0 0
    %165 = vmatprep.subr.bf16.mxu0 0
    %166 = vmatpush1.bf16.msra.mxu0 0
    %167 = vmatprep.subr.bf16.mxu0 0
    %168 = vmatpush1.bf16.msra.mxu0 0
    %169 = vmatprep.subr.bf16.mxu0 0
    %170 = vmatpush1.bf16.msra.mxu0 0
    %171 = vmatprep.mubr.bf16.mxu0 0
    %172 = vmatmul.mubr.bf16.gmra.mrb[0].mxu0 %v89
    %v173 = vpop.f32.mrb[0].mxu0
    %v174 = vadd.f32 0.0, %v173
    %v175 = vpop.f32.mrb[0].mxu0
    %v176 = vpop.f32.mrb[0].mxu0
    %v177 = vadd.f32 0.0, %v176
    %v178 = vpop.f32.mrb[0].mxu0
    %179 = vdwg.mxu0
    %v182 = vunpack.c.l.b16 %v49
    %v183 = vunpack.c.l.b16 %v50
    %v184 = vpack.c.b16 %v183, %v182
    %v202 = vunpack.c.l.b16 %v51
    %v203 = vunpack.c.l.b16 %v52
    %v204 = vunpack.c.l.b16 %v53
    %v205 = vunpack.c.l.b16 %v54
    %v206 = vunpack.c.l.b16 %v55
    %v207 = vunpack.c.l.b16 %v56
    %v208 = vunpack.c.l.b16 %v57
    %v209 = vunpack.c.l.b16 %v58
    %v210 = vunpack.c.l.b16 %v59
    %v211 = vunpack.c.l.b16 %v60
    %v212 = vunpack.c.l.b16 %v61
    %v213 = vunpack.c.l.b16 %v62
    %v214 = vunpack.c.l.b16 %v63
    %v215 = vunpack.c.l.b16 %v64
    %v216 = vunpack.c.l.b16 %v65
    %v217 = vunpack.c.l.b16 %v66
    %v218 = vpack.c.b16 %v203, %v202
    %v219 = vpack.c.b16 %v205, %v204
    %v220 = vpack.c.b16 %v207, %v206
    %v221 = vpack.c.b16 %v209, %v208
    %v222 = vpack.c.b16 %v211, %v210
    %v223 = vpack.c.b16 %v213, %v212
    %v224 = vpack.c.b16 %v215, %v214
    %v225 = vpack.c.b16 %v217, %v216
    %234 = vmatprep.subr.bf16.mxu0 0
    %235 = vmatpush1.bf16.msra.mxu0 %v218
    %236 = vmatprep.subr.bf16.mxu0 0
    %237 = vmatpush1.bf16.msra.mxu0 %v219
    %238 = vmatprep.subr.bf16.mxu0 0
    %239 = vmatpush1.bf16.msra.mxu0 %v220
    %240 = vmatprep.subr.bf16.mxu0 0
    %241 = vmatpush1.bf16.msra.mxu0 %v221
    %242 = vmatprep.subr.bf16.mxu0 0
    %243 = vmatpush1.bf16.msra.mxu0 %v222
    %244 = vmatprep.subr.bf16.mxu0 0
    %245 = vmatpush1.bf16.msra.mxu0 %v223
    %246 = vmatprep.subr.bf16.mxu0 0
    %247 = vmatpush1.bf16.msra.mxu0 %v224
    %248 = vmatprep.subr.bf16.mxu0 0
    %249 = vmatpush1.bf16.msra.mxu0 %v225
    %250 = vmatprep.subr.bf16.mxu0 0
    %251 = vmatpush1.bf16.msra.mxu0 0
    %252 = vmatprep.subr.bf16.mxu0 0
    %253 = vmatpush1.bf16.msra.mxu0 0
    %254 = vmatprep.subr.bf16.mxu0 0
    %255 = vmatpush1.bf16.msra.mxu0 0
    %256 = vmatprep.subr.bf16.mxu0 0
    %257 = vmatpush1.bf16.msra.mxu0 0
    %258 = vmatprep.subr.bf16.mxu0 0
    %259 = vmatpush1.bf16.msra.mxu0 0
    %260 = vmatprep.subr.bf16.mxu0 0
    %261 = vmatpush1.bf16.msra.mxu0 0
    %262 = vmatprep.subr.bf16.mxu0 0
    %263 = vmatpush1.bf16.msra.mxu0 0
    %264 = vmatprep.subr.bf16.mxu0 0
    %265 = vmatpush1.bf16.msra.mxu0 0
    %266 = vmatprep.mubr.bf16.mxu0 0
    %267 = vmatmul.mubr.bf16.gmra.mrb[0].mxu0 %v184
    %v268 = vpop.f32.mrb[0].mxu0
    %v269 = vadd.f32 %v174, %v268
    %v270 = vpop.f32.mrb[0].mxu0
    %v271 = vpop.f32.mrb[0].mxu0
    %v272 = vadd.f32 %v177, %v271
    %v273 = vpop.f32.mrb[0].mxu0
    %274 = vdwg.mxu0
    %v275 = vld [vmem:[%s4] sm:$0x1]
    %v277 = vlaneseq
    %v278 = vshrl.u32 %v277, 7
    %v279 = vsub.s32 0, %v278
    %v280 = vrot.slane %v275, %v279
    %v282 = vadd.f32 %v269, %v280
    %v283 = vadd.f32 %v272, %v280
    %284 = vst [vmem:[%s5] sm:$0xff] %v282
    %285 = vst [vmem:[%s5 + $0x8] sm:$0xff] %v283
    // Predicated region
    $region30: #{lin_rnn_forward.1} parent=1 // pred_check
      _
    $region31: #{lin_rnn_forward.1} parent=1 // pred_check_branch
      %287 = sbr.rel (0) target = $region33
    $region32: #{lin_rnn_forward.1} parent=1 // pred_region
      _
    $region33: #{lin_rnn_forward.1} parent=1 // pred_fallthru
      _
    // Predicated region
    $region34: #{lin_rnn_forward.1} parent=1 // pred_check
      _
    $region35: #{lin_rnn_forward.1} parent=1 // pred_check_branch
      %289 = sbr.rel (0) target = $region37
    $region36: #{lin_rnn_forward.1} parent=1 // pred_region
      _
    $region37: #{lin_rnn_forward.1} parent=1 // pred_fallthru
      _
    %290 = vsyncpa [#allocation3], 1
    %291 = vsyncpa [#allocation5], 1

</llo_original>
